<compile_context>
chip_gen: v7x
topology: tpu7x:2x2x1
jax: 0.10.0
libtpu: 0.0.40
codegen_flags: <defaults>
</compile_context>

<pallas_src>
import functools
import math

import jax
import jax.numpy as jnp
from jax.experimental import pallas as pl
from jax.experimental.pallas import tpu as pltpu


def _round_up(x, m):
    return ((x + m - 1) // m) * m


def _cdiv(a, b):
    return (a + b - 1) // b


def _split_dim(size, max_tile, align):
    """Pick (tile, padded_size, n_tiles).

    tile is a multiple of `align`, tile <= round_up(max_tile, align),
    n_tiles * tile >= size, and padding waste is bounded (< align per tile
    instead of up to ~1x the dimension).
    """
    max_tile = _round_up(max_tile, align)
    padded_min = _round_up(size, align)
    if padded_min <= max_tile:
        return padded_min, padded_min, 1
    n = _cdiv(padded_min, max_tile)
    tile = _round_up(_cdiv(size, n), align)
    return tile, n * tile, n


# --------------------------------------------------------------------------
# Kernels
# --------------------------------------------------------------------------
def _linear_kernel_single_k(x_ref, w_ref, b_ref, o_ref):
    """Whole K fits in one block: no accumulator scratch, no revisits."""
    o_ref[...] = (
        jnp.dot(x_ref[...], w_ref[...], preferred_element_type=jnp.float32)
        + b_ref[...]
    ).astype(o_ref.dtype)


def _linear_kernel_multi_k(x_ref, w_ref, b_ref, o_ref, acc_ref):
    """K-reduction over grid axis 2 with an f32 VMEM accumulator.

    First step initializes acc with the partial product (no separate zeroing
    pass); last step adds the final partial + bias and writes the output
    directly, avoiding a redundant acc store + reload.
    """
    k = pl.program_id(2)
    nk = pl.num_programs(2)
    prod = jnp.dot(x_ref[...], w_ref[...], preferred_element_type=jnp.float32)

    @pl.when(k == 0)
    def _init():
        acc_ref[...] = prod

    @pl.when((k > 0) & (k < nk - 1))
    def _accum():
        acc_ref[...] += prod

    @pl.when(k == nk - 1)
    def _finalize():
        o_ref[...] = (acc_ref[...] + prod + b_ref[...]).astype(o_ref.dtype)


# --------------------------------------------------------------------------
# One-time parameter preparation (hoisted out of the per-call path)
# --------------------------------------------------------------------------
def prepare_linear_params(weight, bias, *, compute_dtype=jnp.bfloat16,
                          tn_max=512, tk_max=1024):
    """Transpose [V,H] -> [H,V], cast, and pad the weight / bias ONCE.

    Call at init and reuse the result; doing this per forward adds a full
    weight-sized HBM round trip on every call.
    """
    V, H = weight.shape
    assert bias.shape == (V,), bias.shape

    tk, Kp, _nk = _split_dim(H, tk_max, 128)
    tn, Np, nj = _split_dim(V, tn_max, 128)

    # Megacore heuristic: keep at least 2 N tiles so both v7x TensorCores get
    # work even when M is tiny (decode).  Cheap: V is large for an lm_head.
    if nj == 1 and Np >= 256:
        nj = 2
        tn = _round_up(_cdiv(V, 2), 128)
        Np = 2 * tn

    w_t = weight.T.astype(compute_dtype)                       # [H, V]
    if Kp != H or Np != V:
        w_t = jnp.pad(w_t, ((0, Kp - H), (0, Np - V)))
    b_p = bias.astype(jnp.float32)                             # bias stays f32
    if Np != V:
        b_p = jnp.pad(b_p, (0, Np - V))
    b_p = b_p.reshape(1, Np)

    meta = dict(H=H, V=V, Kp=Kp, Np=Np, tk=tk, tn=tn,
                compute_dtype=compute_dtype)
    return w_t, b_p, meta


# --------------------------------------------------------------------------
# Forward
# --------------------------------------------------------------------------
def linear_forward(hidden_states, w_p, b_p, *, meta, tm_max=512):
    """Pallas-backed forward of Linear (lm_head): hidden_size -> vocab_size."""
    H, V = meta["H"], meta["V"]
    Kp, Np = meta["Kp"], meta["Np"]
    tk, tn = meta["tk"], meta["tn"]
    cdtype = meta["compute_dtype"]

    *lead, H_in = hidden_states.shape
    assert H_in == H, (H_in, H)
    out_dtype = hidden_states.dtype

    x = hidden_states.reshape(-1, H).astype(cdtype)
    M = x.shape[0]

    # Sublane packing of the M (second-to-last) dim: f32->8, bf16->16, 8bit->32.
    itemsize = jnp.dtype(cdtype).itemsize
    sub = 8 if itemsize >= 4 else (16 if itemsize == 2 else 32)
    tm, Mp, nm = _split_dim(M, tm_max, sub)

    if Mp != M or Kp != H:
        x = jnp.pad(x, ((0, Mp - M), (0, Kp - H)))

    nj = Np // tn
    nk = Kp // tk
    grid = (nm, nj, nk)

    # VMEM budget (double-buffered tiles + f32 acc) -> explicit scoped limit.
    xb = itemsize
    ob = jnp.dtype(out_dtype).itemsize
    vmem_need = 2 * (tm * tk * xb + tk * tn * xb + tm * tn * ob + tn * 4) \
        + tm * tn * 4
    vmem_limit = int(min(100 << 20, max(32 << 20, int(1.5 * vmem_need))))

    cost = pl.CostEstimate(
        flops=2 * M * H * V + M * V,
        transcendentals=0,
        bytes_accessed=int(Mp * Kp * xb * nj + Kp * Np * xb * nm
                           + Np * 4 + Mp * Np * ob),
    )

    if nk == 1:
        kernel = _linear_kernel_single_k
        scratch = []
    else:
        kernel = _linear_kernel_multi_k
        scratch = [pltpu.VMEM((tm, tn), jnp.float32)]

    out = pl.pallas_call(
        kernel,
        out_shape=jax.ShapeDtypeStruct((Mp, Np), out_dtype),
        grid_spec=pltpu.PrefetchScalarGridSpec(
            num_scalar_prefetch=0,
            grid=grid,
            in_specs=[
                pl.BlockSpec((tm, tk), lambda i, j, k: (i, k)),   # activations
                pl.BlockSpec((tk, tn), lambda i, j, k: (k, j)),   # weight [K,V]
                pl.BlockSpec((1, tn), lambda i, j, k: (0, j)),    # bias (f32)
            ],
            out_specs=pl.BlockSpec((tm, tn), lambda i, j, k: (i, j)),
            scratch_shapes=scratch,
        ),
        compiler_params=pltpu.CompilerParams(
            dimension_semantics=("parallel", "parallel", "arbitrary"),
            vmem_limit_bytes=vmem_limit,
        ),
        cost_estimate=cost,
    )(x, w_p, b_p)

    out = out[:M, :V]
    return out.reshape(*lead, V)


# --------------------------------------------------------------------------
# Demo / correctness check
# --------------------------------------------------------------------------
if __name__ == "__main__":
    # Small shapes implied by the module: batch=2, seq=8, hidden_size=32,
    # padded_vocab_size=512.
    B, S, H, V = 2, 8, 32, 512

    key = jax.random.PRNGKey(0)
    kx, kw, kb = jax.random.split(key, 3)

    hidden_states = jax.random.normal(kx, (B, S, H), dtype=jnp.float32)
    weight = (math.sqrt(2.0 / (H + V))
              * jax.random.normal(kw, (V, H), dtype=jnp.float32))
    bias = 0.01 * jax.random.normal(kb, (V,), dtype=jnp.float32)

    # ---- bf16-operand path (recommended default; f32 accumulation) --------
    w16, b16, meta16 = prepare_linear_params(weight, bias,
                                             compute_dtype=jnp.bfloat16)
    fwd16 = jax.jit(functools.partial(linear_forward, meta=meta16))
    out16 = jax.block_until_ready(fwd16(hidden_states, w16, b16))

    x_r = hidden_states.astype(jnp.bfloat16).astype(jnp.float32)
    w_r = weight.astype(jnp.bfloat16).astype(jnp.float32)
    ref16 = jnp.einsum("bsh,vh->bsv", x_r, w_r,
                       precision=jax.lax.Precision.HIGHEST) + bias
    assert out16.shape == (B, S, V) and out16.dtype == jnp.float32
    assert jnp.allclose(out16, ref16, atol=1e-3, rtol=1e-3), (
        f"bf16 path mismatch: {float(jnp.max(jnp.abs(out16 - ref16)))}")

    # ---- exact f32 path (matches the PyTorch module's f32 semantics) ------
    w32, b32, meta32 = prepare_linear_params(weight, bias,
                                             compute_dtype=jnp.float32)
    fwd32 = jax.jit(functools.partial(linear_forward, meta=meta32))
    out32 = jax.block_until_ready(fwd32(hidden_states, w32, b32))

    ref32 = jnp.einsum("bsh,vh->bsv", hidden_states, weight,
                       precision=jax.lax.Precision.HIGHEST) + bias
    assert jnp.allclose(out32, ref32, atol=1e-2, rtol=1e-2), (
        f"f32 path mismatch: {float(jnp.max(jnp.abs(out32 - ref32)))}")

    # ---- multi-tile / multi-K-step path (exercises the accumulator kernel,
    #      ragged M/K/V padding, and small forced tiles) ----------------------
    H2, V2, M2 = 300, 300, 40
    k2x, k2w, k2b = jax.random.split(jax.random.PRNGKey(1), 3)
    x2 = jax.random.normal(k2x, (1, M2, H2), dtype=jnp.float32)
    w2 = (math.sqrt(2.0 / (H2 + V2))
          * jax.random.normal(k2w, (V2, H2), dtype=jnp.float32))
    bb2 = 0.01 * jax.random.normal(k2b, (V2,), dtype=jnp.float32)

    w2p, b2p, meta2 = prepare_linear_params(w2, bb2, compute_dtype=jnp.float32,
                                            tn_max=128, tk_max=128)
    fwd2 = jax.jit(functools.partial(linear_forward, meta=meta2, tm_max=16))
    out2 = jax.block_until_ready(fwd2(x2, w2p, b2p))
    ref2 = jnp.einsum("bsh,vh->bsv", x2, w2,
                      precision=jax.lax.Precision.HIGHEST) + bb2
    assert out2.shape == (1, M2, V2)
    assert jnp.allclose(out2, ref2, atol=1e-2, rtol=1e-2), (
        f"multi-k path mismatch: {float(jnp.max(jnp.abs(out2 - ref2)))}")

    print("KERNEL_OK")
</pallas_src>

<mosaic_0001>
module attributes {stable_mosaic.version = 11 : i64} {
  func.func @_linear_kernel_single_k(%arg0: i32, %arg1: i32, %arg2: i32, %arg3: memref<16x128xbf16, #tpu.memory_space<vmem>>, %arg4: memref<128x256xbf16, #tpu.memory_space<vmem>>, %arg5: memref<1x256xf32, #tpu.memory_space<vmem>>, %arg6: memref<16x256xf32, #tpu.memory_space<vmem>>) attributes {dimension_semantics = [#tpu.dimension_semantics<parallel>, #tpu.dimension_semantics<parallel>, #tpu.dimension_semantics<arbitrary>], iteration_bounds = array<i64: 1, 2, 1>, scalar_prefetch = 0 : i64, scratch_operands = 0 : i64, tpu.core_type = #tpu.core_type<tc>, window_params = [{transform_indices = @transform_0, window_bounds = array<i64: 16, 128>}, {transform_indices = @transform_1, window_bounds = array<i64: 128, 256>}, {transform_indices = @transform_2, window_bounds = array<i64: 1, 256>}, {transform_indices = @transform_3, window_bounds = array<i64: 16, 256>}]} {
    %c0 = arith.constant 0 : index
    %c0_0 = arith.constant 0 : index
    %0 = vector.load %arg3[%c0, %c0_0] : memref<16x128xbf16, #tpu.memory_space<vmem>>, vector<16x128xbf16>
    %c0_1 = arith.constant 0 : index
    %c0_2 = arith.constant 0 : index
    %1 = vector.load %arg4[%c0_1, %c0_2] : memref<128x256xbf16, #tpu.memory_space<vmem>>, vector<128x256xbf16>
    %cst = arith.constant dense<0.000000e+00> : vector<16x256xf32>
    %2 = tpu.matmul %0, %1, %cst {dimension_numbers = #tpu.dot_dimension_numbers<[1], [0], [0], [1], [0, 0, 1, 1], [], []>} : vector<16x128xbf16>, vector<128x256xbf16>, vector<16x256xf32> -> vector<16x256xf32>
    %c0_3 = arith.constant 0 : index
    %c0_4 = arith.constant 0 : index
    %3 = vector.load %arg5[%c0_3, %c0_4] : memref<1x256xf32, #tpu.memory_space<vmem>>, vector<1x256xf32>
    %4 = vector.broadcast %3 : vector<1x256xf32> to vector<16x256xf32>
    %5 = arith.addf %2, %4 : vector<16x256xf32>
    %c0_5 = arith.constant 0 : index
    %c0_6 = arith.constant 0 : index
    %6 = vector.load %arg6[%c0_5, %c0_6] : memref<16x256xf32, #tpu.memory_space<vmem>>, vector<16x256xf32>
    tpu.vector_store %arg6[%c0_5, %c0_6], %5 {strides = array<i32>} : memref<16x256xf32, #tpu.memory_space<vmem>>, vector<16x256xf32>,
    return
  }
  func.func @transform_0(%arg0: i32, %arg1: i32, %arg2: i32) -> (i32, i32) {
    %c0_i32 = arith.constant 0 : i32
    return %arg0, %arg2 : i32, i32
  }
  func.func @transform_1(%arg0: i32, %arg1: i32, %arg2: i32) -> (i32, i32) {
    %c0_i32 = arith.constant 0 : i32
    return %arg2, %arg1 : i32, i32
  }
  func.func @transform_2(%arg0: i32, %arg1: i32, %arg2: i32) -> (i32, i32) {
    %c0_i32 = arith.constant 0 : i32
    %c0_i32_0 = arith.constant 0 : i32
    return %c0_i32, %arg1 : i32, i32
  }
  func.func @transform_3(%arg0: i32, %arg1: i32, %arg2: i32) -> (i32, i32) {
    %c0_i32 = arith.constant 0 : i32
    return %arg0, %arg1 : i32, i32
  }
}

</mosaic_0001>

<llo_original>
// kernel: linear_forward.1
$region0: #{linear_forward.1}
  #allocation0 [shape = 'u32[]', space=smem, size = 0x4, offset = 0x4, fixed_abs, tag = 'smem constant byte address 0x4 - core index']
  #allocation1 [shape = 'u32[144,128]{1,0:T(1,128)}', space=vmem, size = 0x12000, scoped, tag = 'internal scratch']
  %s0 = inlined_call_operand.vmem [shape: bf16[16,128], index: 0, kind: input, shape index: {}]
  %s1 = inlined_call_operand.hbm [shape: bf16[128,512], index: 1, kind: input, shape index: {}]
  %s2 = inlined_call_operand.vmem [shape: f32[1,512], index: 2, kind: input, shape index: {}]
  %s3 = inlined_call_operand.hbm [shape: f32[16,512], index: 3, kind: output, shape index: {}]
  %s4 = sld [smem:[#allocation0]]
  $region49: #{linear_forward.1} parent=0
    _
  %s6 = ssub.s32 1, %s4
  %s7 = scalar_select 0, %s6, %s4
  $region1: #{linear_forward.1} parent=0
    #allocation2 [shape = 'u8[131072]{0}', space=vmem, size = 0x20000, scoped, tag = 'input window, operand 1']
    #allocation3 [shape = 's32[2]{0}', space=sflag, size = 0x8, scoped, tag = 'scoped memory for linear_forward.1']
    #allocation4 [shape = 's32[2]{0}', space=sflag, size = 0x8, scoped, tag = 'scoped memory for linear_forward.1']
    #allocation5 [shape = 'u8[32768]{0}', space=vmem, size = 0x8000, scoped, tag = 'output window, operand 0']
    %8 = vsyncpa [#allocation3], 0
    %s9 = scalar_lea.sflag [#allocation3], 1
    %10 = vsyncpa %s9, 0
    %11 = vsyncpa [#allocation4], 0
    %s12 = scalar_lea.sflag [#allocation4], 1
    %13 = vsyncpa %s12, 0
    loop: start=0, step=1, limit=4
    $region2: #{linear_forward.1} parent=1 // loop_pre_header
      _
    $region3: #{linear_forward.1} parent=1 // loop_header
      %s15 = sphi 0, %s19
      %p16 = scmp.ge.s32.totalorder %s15, 4
      %s22 = sphi 0, %s41
      %s23 = sphi 0, %s37
      %s24 = sphi 0, %s33
      %s25 = sphi 0, %s22
      %s26 = sphi 0, %s23
      %s27 = sphi 0, %s24
      %s28 = sphi 0, %s25
      %s29 = sphi 0, %s26
      %s30 = sphi 0, %s27
      %s46 = sphi 0, %s48
      %s49 = sphi 0, %s46
      %s50 = sphi 0, %s49
      %s66 = sphi 0, %s50
      %s74 = sphi 0, %s76
      %s77 = sphi 0, %s74
      %s78 = sphi 0, %s77
      %s94 = sphi 0, %s78
      %s100 = sphi 0, %s102
      %s103 = sphi 0, %s100
      %s104 = sphi 0, %s103
      %s120 = sphi 0, %s104
      %s128 = sphi 0, %s130
      %s131 = sphi 0, %s128
      %s132 = sphi 0, %s131
      %s148 = sphi 0, %s132
    $region4: #{linear_forward.1} parent=1 // loop_header_branch
      %18 = sbr.rel (%p16) target = $region8
    $region5: #{linear_forward.1} parent=1 // loop_body
      %s20 = ssub.s32 %s15, 1
      %s21 = ssub.s32 %s15, 2
      %s31 = sadd.s32 1, %s24
      %p32 = scmp.ge.s32.totalorder %s31, 1
      %s33 = scalar_select %p32, 0, %s31
      %s34 = sadd.s32 1, %s23
      %s35 = scalar_select %p32, %s34, %s23
      %p36 = scmp.ge.s32.totalorder %s35, 2
      %s37 = scalar_select %p36, 0, %s35
      %s38 = sadd.s32 1, %s22
      %s39 = scalar_select %p36, %s38, %s22
      %p40 = scmp.ge.s32.totalorder %s39, 1
      %s41 = scalar_select %p40, 0, %s39
      %s42 = ssub.s32 %s22, %s41
      %s43 = ssub.s32 %s24, %s33
      %s44 = sor.u32 %s42, %s43
      %p45 = scmp.eq.s32.totalorder %s44, 0
      %s47 = sadd.s32 %s46, 1
      %s48 = scalar_select %p45, %s46, %s47
      %p51 = pneg %p45
      %p52 = scmp.eq.s32.totalorder %s15, 1
      %p53 = por %p51, %p52
      %p54 = scmp.ne.s32.totalorder %s46, %s49
      %p55 = scmp.eq.s32.totalorder %s15, 0
      %p56 = por %p54, %p55
      %p57 = scmp.ne.s32.totalorder %s46, %s49
      %p58 = scmp.eq.s32.totalorder %s20, 1
      %p59 = por %p57, %p58
      %p60 = scmp.ne.s32.totalorder %s49, %s50
      %p61 = scmp.eq.s32.totalorder %s20, 0
      %p62 = por %p60, %p61
      %p63 = scmp.ne.s32.totalorder %s49, %s50
      %p64 = scmp.eq.s32.totalorder %s21, 1
      %p65 = por %p63, %p64
      %p67 = scmp.ne.s32.totalorder %s50, %s66
      %p68 = scmp.eq.s32.totalorder %s21, 0
      %p69 = por %p67, %p68
      %s70 = ssub.s32 %s24, %s33
      %s71 = ssub.s32 %s23, %s37
      %s72 = sor.u32 %s70, %s71
      %p73 = scmp.eq.s32.totalorder %s72, 0
      %s75 = sadd.s32 %s74, 1
      %s76 = scalar_select %p73, %s74, %s75
      %p79 = pneg %p73
      %p80 = scmp.eq.s32.totalorder %s15, 1
      %p81 = por %p79, %p80
      %p82 = scmp.ne.s32.totalorder %s74, %s77
      %p83 = scmp.eq.s32.totalorder %s15, 0
      %p84 = por %p82, %p83
      %p85 = scmp.ne.s32.totalorder %s74, %s77
      %p86 = scmp.eq.s32.totalorder %s20, 1
      %p87 = por %p85, %p86
      %p88 = scmp.ne.s32.totalorder %s77, %s78
      %p89 = scmp.eq.s32.totalorder %s20, 0
      %p90 = por %p88, %p89
      %p91 = scmp.ne.s32.totalorder %s77, %s78
      %p92 = scmp.eq.s32.totalorder %s21, 1
      %p93 = por %p91, %p92
      %p95 = scmp.ne.s32.totalorder %s78, %s94
      %p96 = scmp.eq.s32.totalorder %s21, 0
      %p97 = por %p95, %p96
      %s98 = ssub.s32 %s23, %s37
      %p99 = scmp.eq.s32.totalorder %s98, 0
      %s101 = sadd.s32 %s100, 1
      %s102 = scalar_select %p99, %s100, %s101
      %p105 = pneg %p99
      %p106 = scmp.eq.s32.totalorder %s15, 1
      %p107 = por %p105, %p106
      %p108 = scmp.ne.s32.totalorder %s100, %s103
      %p109 = scmp.eq.s32.totalorder %s15, 0
      %p110 = por %p108, %p109
      %p111 = scmp.ne.s32.totalorder %s100, %s103
      %p112 = scmp.eq.s32.totalorder %s20, 1
      %p113 = por %p111, %p112
      %p114 = scmp.ne.s32.totalorder %s103, %s104
      %p115 = scmp.eq.s32.totalorder %s20, 0
      %p116 = por %p114, %p115
      %p117 = scmp.ne.s32.totalorder %s103, %s104
      %p118 = scmp.eq.s32.totalorder %s21, 1
      %p119 = por %p117, %p118
      %p121 = scmp.ne.s32.totalorder %s104, %s120
      %p122 = scmp.eq.s32.totalorder %s21, 0
      %p123 = por %p121, %p122
      %s124 = ssub.s32 %s22, %s41
      %s125 = ssub.s32 %s23, %s37
      %s126 = sor.u32 %s124, %s125
      %p127 = scmp.eq.s32.totalorder %s126, 0
      %s129 = sadd.s32 %s128, 1
      %s130 = scalar_select %p127, %s128, %s129
      %p133 = pneg %p127
      %p134 = scmp.eq.s32.totalorder %s15, 1
      %p135 = por %p133, %p134
      %p136 = scmp.ne.s32.totalorder %s128, %s131
      %p137 = scmp.eq.s32.totalorder %s15, 0
      %p138 = por %p136, %p137
      %p139 = scmp.ne.s32.totalorder %s128, %s131
      %p140 = scmp.eq.s32.totalorder %s20, 1
      %p141 = por %p139, %p140
      %p142 = scmp.ne.s32.totalorder %s131, %s132
      %p143 = scmp.eq.s32.totalorder %s20, 0
      %p144 = por %p142, %p143
      %p145 = scmp.ne.s32.totalorder %s131, %s132
      %p146 = scmp.eq.s32.totalorder %s21, 1
      %p147 = por %p145, %p146
      %p149 = scmp.ne.s32.totalorder %s132, %s148
      %p150 = scmp.eq.s32.totalorder %s21, 0
      %p151 = por %p149, %p150
      %p152 = scmp.le.s32.totalorder 1, %s15
      %p153 = scmp.lt.s32.totalorder %s15, 3
      %p154 = pnand %p152, %p153
      %p155 = pneg %p154
      // Predicated region
      $region9: #{linear_forward.1} parent=5 // pred_check
        _
      $region10: #{linear_forward.1} parent=5 // pred_check_branch
        %157 = sbr.rel (%p154) target = $region12
      $region11: #{linear_forward.1} parent=5 // pred_region
        %s158 = ssub.s32 %s15, 1
        // Predicated region
        $region13: #{linear_forward.1} parent=11 // pred_check
          %p159 = pneg %p62
        $region14: #{linear_forward.1} parent=11 // pred_check_branch
          %161 = sbr.rel (%p159) target = $region16
        $region15: #{linear_forward.1} parent=11 // pred_region
          %s162 = smul.u32 2, %s25
          %p163 = scmp.lt.s32.totalorder %s162, 1
          %s164 = scalar_select %p163, %s162, 1
          %p165 = scmp.lt.s32.totalorder %s27, 0
          %s166 = scalar_select %p165, %s27, 0
          %s167 = sadd.s32 %s166, %s164
          %s168 = smul.addr %s167, 4
          %s169 = scalar_lea.vmem %s0, %s168
          %s170 = smul.u32 2, %s25
        $region16: #{linear_forward.1} parent=11 // pred_fallthru
          _
      $region12: #{linear_forward.1} parent=5 // pred_fallthru
        _
      %p171 = scmp.lt.s32.totalorder %s15, 2
      // Predicated region
      $region17: #{linear_forward.1} parent=5 // pred_check
        %p172 = pneg %p171
      $region18: #{linear_forward.1} parent=5 // pred_check_branch
        %174 = sbr.rel (%p172) target = $region20
      $region19: #{linear_forward.1} parent=5 // pred_region
        // Predicated region
        $region21: #{linear_forward.1} parent=19 // pred_check
          %p175 = pneg %p84
        $region22: #{linear_forward.1} parent=19 // pred_check_branch
          %177 = sbr.rel (%p175) target = $region24
        $region23: #{linear_forward.1} parent=19 // pred_region
          %s178 = sand.u32 %s74, 1
          %s179 = scalar_lea.sflag [#allocation3], %s178
          %s180 = sand.u32 %s74, 1
          %s181 = smul.addr %s180, 128
          %s182 = scalar_lea.vmem [#allocation2], %s181
          %s183 = smul.u32 16, %s24
          %s184 = smul.u32 2, %s23
          %s186 = ssub.s32 2048, 2048
          %187 = vsyncadd %s179, %s186
          %s188 = smul.addr %s183, 4
          %s189 = sadd.s32 %s184, %s188
          %s190 = smul.addr %s189, 64
          %s191 = scalar_lea.hbm %s1, %s190
          %s192 = sshll.u32 %s182, 4
          %s193 = int_to_ptr.vmem [resolvable:$true] %s192
          %198 = dma.hbm_to_vmem [thread:$0]  %s191, 2048, %s193, %s179, 256, 128, 8
        $region24: #{linear_forward.1} parent=19 // pred_fallthru
          _
        // Predicated region
        $region25: #{linear_forward.1} parent=19 // pred_check
          %p199 = pneg %p110
        $region26: #{linear_forward.1} parent=19 // pred_check_branch
          %201 = sbr.rel (%p199) target = $region28
        $region27: #{linear_forward.1} parent=19 // pred_region
          %s202 = smul.u32 2, %s23
          %p203 = scmp.lt.s32.totalorder %s202, 3
          %s204 = scalar_select %p203, %s202, 3
          %s205 = scalar_lea.vmem %s2, %s204
          %s206 = smul.u32 2, %s23
        $region28: #{linear_forward.1} parent=19 // pred_fallthru
          _
      $region20: #{linear_forward.1} parent=5 // pred_fallthru
        _
      %p207 = scmp.le.s32.totalorder 1, %s15
      %p208 = scmp.lt.s32.totalorder %s15, 3
      %p209 = pnand %p207, %p208
      %p210 = pneg %p209
      // Predicated region
      $region29: #{linear_forward.1} parent=5 // pred_check
        _
      $region30: #{linear_forward.1} parent=5 // pred_check_branch
        %212 = sbr.rel (%p209) target = $region32
      $region31: #{linear_forward.1} parent=5 // pred_region
        %s213 = ssub.s32 %s15, 1
        %s214 = sand.u32 %s77, 1
        %s215 = scalar_lea.sflag [#allocation3], %s214
        %s216 = sand.u32 %s77, 1
        %s217 = smul.addr %s216, 128
        %s218 = scalar_lea.vmem [#allocation2], %s217
        // Predicated region
        $region33: #{linear_forward.1} parent=31 // pred_check
          %p219 = pneg %p90
        $region34: #{linear_forward.1} parent=31 // pred_check_branch
          %221 = sbr.rel (%p219) target = $region36
        $region35: #{linear_forward.1} parent=31 // pred_region
          %222 = dma.done %s215, 2048
        $region36: #{linear_forward.1} parent=31 // pred_fallthru
          _
        %s223 = smul.u32 2, %s25
        %p224 = scmp.lt.s32.totalorder %s223, 1
        %s225 = scalar_select %p224, %s223, 1
        %p226 = scmp.lt.s32.totalorder %s27, 0
        %s227 = scalar_select %p226, %s27, 0
        %s228 = sadd.s32 %s227, %s225
        %s229 = smul.addr %s228, 4
        %s230 = scalar_lea.vmem %s0, %s229
        %p231 = pneg %p62
        %p232 = pneg %p59
        %s233 = sand.u32 %s77, 1
        %s234 = scalar_lea.sflag [#allocation3], %s233
        %s235 = sand.u32 %s77, 1
        %s236 = smul.addr %s235, 128
        %s237 = scalar_lea.vmem [#allocation2], %s236
        %p238 = pneg %p90
        %p239 = pneg %p87
        %s240 = smul.u32 2, %s26
        %p241 = scmp.lt.s32.totalorder %s240, 3
        %s242 = scalar_select %p241, %s240, 3
        %s243 = scalar_lea.vmem %s2, %s242
        %p244 = pneg %p116
        %p245 = pneg %p113
        %p246 = pneg %p144
        %p247 = pneg %p141
        %s248 = sand.u32 %s131, 1
        %s249 = scalar_lea.sflag [#allocation4], %s248
        %s250 = sand.u32 %s131, 1
        %s251 = smul.addr %s250, 32
        %s252 = scalar_lea.vmem [#allocation5], %s251
        %s253 = smul.u32 2, %s25
        %p254 = scmp.lt.s32.totalorder %s253, 1
        %s255 = scalar_select %p254, %s253, 1
        %p256 = scmp.lt.s32.totalorder %s27, 0
        %s257 = scalar_select %p256, %s27, 0
        %s258 = sadd.s32 %s257, %s255
        %s259 = smul.addr %s258, 4
        %s260 = scalar_lea.vmem %s0, %s259
        %s261 = smul.u32 2, %s25
        %s262 = smul.u32 16, %s27
        %s263 = smul.u32 2, %s26
        %s264 = smul.u32 2, %s26
        %p265 = scmp.lt.s32.totalorder %s264, 3
        %s266 = scalar_select %p265, %s264, 3
        %s267 = scalar_lea.vmem %s2, %s266
        %s268 = smul.u32 2, %s26
        %s269 = smul.u32 2, %s25
        %s270 = smul.u32 2, %s26
        %v272 = vld [vmem:[%s260] sm:$0xf]
        %v273 = vld [vmem:[%s260 + $0x4] sm:$0xf]
        %v274 = vld [vmem:[%s218] sm:$0xff]
        %v275 = vld [vmem:[%s218 + $0x8] sm:$0xff]
        %v276 = vld [vmem:[%s218 + $0x10] sm:$0xff]
        %v277 = vld [vmem:[%s218 + $0x18] sm:$0xff]
        %v278 = vld [vmem:[%s218 + $0x20] sm:$0xff]
        %v279 = vld [vmem:[%s218 + $0x28] sm:$0xff]
        %v280 = vld [vmem:[%s218 + $0x30] sm:$0xff]
        %v281 = vld [vmem:[%s218 + $0x38] sm:$0xff]
        %v282 = vld [vmem:[%s218 + $0x40] sm:$0xff]
        %v283 = vld [vmem:[%s218 + $0x48] sm:$0xff]
        %v284 = vld [vmem:[%s218 + $0x50] sm:$0xff]
        %v285 = vld [vmem:[%s218 + $0x58] sm:$0xff]
        %v286 = vld [vmem:[%s218 + $0x60] sm:$0xff]
        %v287 = vld [vmem:[%s218 + $0x68] sm:$0xff]
        %v288 = vld [vmem:[%s218 + $0x70] sm:$0xff]
        %v289 = vld [vmem:[%s218 + $0x78] sm:$0xff]
        %v290 = vld [vmem:[%s267] sm:$0x3]
        %v292 = vlaneseq
        %v293 = vshrl.u32 %v292, 7
        %v294 = vsub.s32 0, %v293
        %v295 = vrot.slane %v290, %v294
        %v296 = vlaneseq
        %v297 = vshrl.u32 %v296, 7
        %v298 = vsub.s32 1, %v297
        %v299 = vrot.slane %v290, %v298
        %v304 = vunpack.c.l.b16 %v272
        %v305 = vunpack.c.l.b16 %v273
        %v306 = vpack.c.b16 %v305, %v304
        %v324 = vunpack.c.l.b16 %v274
        %v325 = vunpack.c.h.b16 %v274
        %v326 = vunpack.c.l.b16 %v275
        %v327 = vunpack.c.h.b16 %v275
        %v328 = vunpack.c.l.b16 %v276
        %v329 = vunpack.c.h.b16 %v276
        %v330 = vunpack.c.l.b16 %v277
        %v331 = vunpack.c.h.b16 %v277
        %v332 = vunpack.c.l.b16 %v278
        %v333 = vunpack.c.h.b16 %v278
        %v334 = vunpack.c.l.b16 %v279
        %v335 = vunpack.c.h.b16 %v279
        %v336 = vunpack.c.l.b16 %v280
        %v337 = vunpack.c.h.b16 %v280
        %v338 = vunpack.c.l.b16 %v281
        %v339 = vunpack.c.h.b16 %v281
        %v340 = vunpack.c.l.b16 %v282
        %v341 = vunpack.c.h.b16 %v282
        %v342 = vunpack.c.l.b16 %v283
        %v343 = vunpack.c.h.b16 %v283
        %v344 = vunpack.c.l.b16 %v284
        %v345 = vunpack.c.h.b16 %v284
        %v346 = vunpack.c.l.b16 %v285
        %v347 = vunpack.c.h.b16 %v285
        %v348 = vunpack.c.l.b16 %v286
        %v349 = vunpack.c.h.b16 %v286
        %v350 = vunpack.c.l.b16 %v287
        %v351 = vunpack.c.h.b16 %v287
        %v352 = vunpack.c.l.b16 %v288
        %v353 = vunpack.c.h.b16 %v288
        %v354 = vunpack.c.l.b16 %v289
        %v355 = vunpack.c.h.b16 %v289
        %v356 = vpack.c.b16 %v326, %v324
        %v357 = vpack.c.b16 %v327, %v325
        %v358 = vpack.c.b16 %v330, %v328
        %v359 = vpack.c.b16 %v331, %v329
        %v360 = vpack.c.b16 %v334, %v332
        %v361 = vpack.c.b16 %v335, %v333
        %v362 = vpack.c.b16 %v338, %v336
        %v363 = vpack.c.b16 %v339, %v337
        %v364 = vpack.c.b16 %v342, %v340
        %v365 = vpack.c.b16 %v343, %v341
        %v366 = vpack.c.b16 %v346, %v344
        %v367 = vpack.c.b16 %v347, %v345
        %v368 = vpack.c.b16 %v350, %v348
        %v369 = vpack.c.b16 %v351, %v349
        %v370 = vpack.c.b16 %v354, %v352
        %v371 = vpack.c.b16 %v355, %v353
        %388 = vmatprep.subr.bf16.mxu0 %v357
        %389 = vmatpush1.bf16.msra.mxu0 %v356
        %390 = vmatprep.subr.bf16.mxu0 %v359
        %391 = vmatpush1.bf16.msra.mxu0 %v358
        %392 = vmatprep.subr.bf16.mxu0 %v361
        %393 = vmatpush1.bf16.msra.mxu0 %v360
        %394 = vmatprep.subr.bf16.mxu0 %v363
        %395 = vmatpush1.bf16.msra.mxu0 %v362
        %396 = vmatprep.subr.bf16.mxu0 %v365
        %397 = vmatpush1.bf16.msra.mxu0 %v364
        %398 = vmatprep.subr.bf16.mxu0 %v367
        %399 = vmatpush1.bf16.msra.mxu0 %v366
        %400 = vmatprep.subr.bf16.mxu0 %v369
        %401 = vmatpush1.bf16.msra.mxu0 %v368
        %402 = vmatprep.subr.bf16.mxu0 %v371
        %403 = vmatpush1.bf16.msra.mxu0 %v370
        %404 = vmatprep.subr.bf16.mxu0 0
        %405 = vmatpush1.bf16.msra.mxu0 0
        %406 = vmatprep.subr.bf16.mxu0 0
        %407 = vmatpush1.bf16.msra.mxu0 0
        %408 = vmatprep.subr.bf16.mxu0 0
        %409 = vmatpush1.bf16.msra.mxu0 0
        %410 = vmatprep.subr.bf16.mxu0 0
        %411 = vmatpush1.bf16.msra.mxu0 0
        %412 = vmatprep.subr.bf16.mxu0 0
        %413 = vmatpush1.bf16.msra.mxu0 0
        %414 = vmatprep.subr.bf16.mxu0 0
        %415 = vmatpush1.bf16.msra.mxu0 0
        %416 = vmatprep.subr.bf16.mxu0 0
        %417 = vmatpush1.bf16.msra.mxu0 0
        %418 = vmatprep.subr.bf16.mxu0 0
        %419 = vmatpush1.bf16.msra.mxu0 0
        %420 = vmatprep.mubr.bf16.mxu0 0
        %421 = vmatmul.mubr.bf16.gmra.mrb[0].mxu0 %v306
        %v422 = vpop.f32.mrb[0].mxu0
        %v423 = vadd.f32 %v295, %v422
        %v424 = vpop.f32.mrb[0].mxu0
        %v425 = vadd.f32 %v299, %v424
        %v426 = vpop.f32.mrb[0].mxu0
        %v427 = vadd.f32 %v295, %v426
        %v428 = vpop.f32.mrb[0].mxu0
        %v429 = vadd.f32 %v299, %v428
        %430 = vdwg.mxu0
        %431 = vst [vmem:[%s252] sm:$0xff] %v423
        %432 = vst [vmem:[%s252 + $0x8] sm:$0xff] %v425
        %433 = vst [vmem:[%s252 + $0x10] sm:$0xff] %v427
        %434 = vst [vmem:[%s252 + $0x18] sm:$0xff] %v429
        %s435 = sand.u32 %s131, 1
        %s436 = scalar_lea.sflag [#allocation4], %s435
        %s437 = sand.u32 %s131, 1
        %s438 = smul.addr %s437, 32
        %s439 = scalar_lea.vmem [#allocation5], %s438
        // Predicated region
        $region37: #{linear_forward.1} parent=31 // pred_check
          %p440 = pneg %p141
        $region38: #{linear_forward.1} parent=31 // pred_check_branch
          %442 = sbr.rel (%p440) target = $region40
        $region39: #{linear_forward.1} parent=31 // pred_region
          %s443 = smul.u32 2, %s25
          %s444 = smul.u32 2, %s26
          %s446 = ssub.s32 512, 512
          %447 = vsyncadd %s436, %s446
          %s448 = smul.addr %s443, 4
          %s449 = sadd.s32 %s444, %s448
          %s450 = smul.addr %s449, 128
          %s451 = scalar_lea.hbm %s3, %s450
          %s452 = sshll.u32 %s439, 4
          %s453 = int_to_ptr.vmem [resolvable:$true] %s452
          %458 = dma.vmem_to_hbm [thread:$0]  %s453, 512, %s451, %s436, 256, 512, 16
        $region40: #{linear_forward.1} parent=31 // pred_fallthru
          _
      $region32: #{linear_forward.1} parent=5 // pred_fallthru
        _
      %p459 = scmp.le.s32.totalorder 2, %s15
      // Predicated region
      $region41: #{linear_forward.1} parent=5 // pred_check
        %p460 = pneg %p459
      $region42: #{linear_forward.1} parent=5 // pred_check_branch
        %462 = sbr.rel (%p460) target = $region44
      $region43: #{linear_forward.1} parent=5 // pred_region
        %s463 = ssub.s32 %s15, 2
        // Predicated region
        $region45: #{linear_forward.1} parent=43 // pred_check
          %p464 = pneg %p147
        $region46: #{linear_forward.1} parent=43 // pred_check_branch
          %466 = sbr.rel (%p464) target = $region48
        $region47: #{linear_forward.1} parent=43 // pred_region
          %s467 = sand.u32 %s132, 1
          %s468 = scalar_lea.sflag [#allocation4], %s467
          %s469 = sand.u32 %s132, 1
          %s470 = smul.addr %s469, 32
          %s471 = scalar_lea.vmem [#allocation5], %s470
          %472 = dma.done %s468, 512
        $region48: #{linear_forward.1} parent=43 // pred_fallthru
          _
      $region44: #{linear_forward.1} parent=5 // pred_fallthru
        _
    $region6: #{linear_forward.1} parent=1 // loop_footer
      %s19 = sadd.s32 1, %s15
    $region7: #{linear_forward.1} parent=1 // loop_footer_branch
      %14 = sbr.rel target = $region3
    $region8: #{linear_forward.1} parent=1 // loop_exit
      _
    %473 = vsyncpa [#allocation3], 1
    %s474 = scalar_lea.sflag [#allocation3], 1
    %475 = vsyncpa %s474, 1
    %476 = vsyncpa [#allocation4], 1
    %s477 = scalar_lea.sflag [#allocation4], 1
    %478 = vsyncpa %s477, 1

</llo_original>
